<compile_context>
chip_gen: v7x
topology: tpu7x:2x2x1
jax: 0.10.0
libtpu: 0.0.40
codegen_flags: <defaults>
</compile_context>

<pallas_src>
import functools

import jax
import jax.numpy as jnp
from jax.experimental import pallas as pl
from jax.experimental.pallas import tpu as pltpu


def _round_up(x, m):
    return ((x + m - 1) // m) * m


def classifier_kernel(x_ref, w_ref, b_ref, logits_ref, preds_ref, *, compute_dtype):
    """One M-tile of the linear classifier (x @ W + b) followed by argmax.

    x_ref:      [TM, H]  native dtype (f32 here)  activation tile (double-buffered)
    w_ref:      [H, L]   bf16   classifier weight, resident across the grid
    b_ref:      [1, L]   f32    bias, resident across the grid
    logits_ref: [TM, L]  f32
    preds_ref:  [TM, 1]  int32  first-occurrence argmax over the L labels
    """
    # Cast inside the kernel: HBM traffic stays at the input's native dtype and
    # no wrapper-side full-slab cast pass is needed; MXU runs bf16 / f32 accum.
    x = x_ref[...].astype(compute_dtype)
    logits = jnp.dot(x, w_ref[...], preferred_element_type=jnp.float32) + b_ref[...]
    logits_ref[...] = logits.astype(logits_ref.dtype)

    # First-occurrence argmax built from max / where / min so it lowers cleanly
    # for any (narrow) label width L.
    n_labels = logits.shape[-1]
    col = jax.lax.broadcasted_iota(jnp.int32, logits.shape, 1)
    row_max = jnp.max(logits, axis=-1, keepdims=True)
    picked = jnp.where(logits == row_max, col, jnp.int32(n_labels))
    preds_ref[...] = jnp.min(picked, axis=-1, keepdims=True).astype(jnp.int32)


def my_model_forward(sequence_output, w, b, *, tm=None, compute_dtype=jnp.bfloat16):
    """Equivalent of myModel.forward given the PLM's sequence_output.

    sequence_output: [B, S, H] float32 (or bf16)
    w:               [H, L]    float32  (classifier weight in x@W form)
    b:               [L]       float32
    returns: (logits [B, S, L] float32, preds [B, S] int32)
    """
    B, S, H = sequence_output.shape
    L = w.shape[1]
    M = B * S

    # Free, metadata-only reshape (row-major); no HBM pass.
    x2d = sequence_output.reshape(M, H)
    w_c = w.astype(compute_dtype)                   # tiny [H, L] one-time cast
    b2d = b.astype(jnp.float32).reshape(1, L)

    x_itemsize = jnp.dtype(x2d.dtype).itemsize
    w_itemsize = jnp.dtype(w_c.dtype).itemsize

    # Per-core VMEM capacity; fall back to the smallest (v7x) value if unknown.
    try:
        vmem_cap = int(pltpu.get_tpu_info().vmem_capacity_bytes)
    except Exception:
        vmem_cap = 64 * 1024 * 1024

    if tm is None:
        # 128 MiB chips (v5e/v6e): bigger tiles amortize per-step overhead;
        # 64 MiB (v7x): stay a bit smaller.
        tm = 4096 if vmem_cap >= 96 * 1024 * 1024 else 2048

    # Row tile: multiple of 8, at most tm, and capped so the grid has >= 2 steps
    # whenever M allows it (keeps both TensorCores busy on dual-TC chips).
    half_rows = _round_up(pl.cdiv(M, 2), 8) if M > 8 else 8
    TM = max(8, min(_round_up(tm, 8), half_rows))

    def footprint(t):
        # Double-buffered VMEM blocks, accounting for (8, 128) lane padding.
        x_buf = t * _round_up(H, 128) * x_itemsize
        logits_buf = t * _round_up(L, 128) * 4
        preds_buf = t * 128 * 4
        w_buf = _round_up(H, 8) * _round_up(L, 128) * w_itemsize
        b_buf = 8 * 128 * 4
        return 2 * (x_buf + logits_buf + preds_buf + w_buf + b_buf)

    # Shrink TM if the double-buffered footprint would crowd VMEM.
    budget = int(0.6 * vmem_cap)
    while TM > 8 and footprint(TM) > budget:
        TM = max(8, _round_up(TM // 2, 8))

    # Generous headroom over the computed footprint (Mosaic internal scratch etc.).
    vmem_limit = footprint(TM) + 16 * 1024 * 1024
    vmem_limit = max(vmem_limit, 32 * 1024 * 1024)
    vmem_limit = min(vmem_limit, int(0.75 * vmem_cap))

    grid = (pl.cdiv(M, TM),)

    cost = pl.CostEstimate(
        flops=2 * M * H * L,
        transcendentals=0,
        bytes_accessed=(M * H * x_itemsize        # x read
                        + H * L * w_itemsize      # w read
                        + L * 4                   # b read
                        + M * L * 4               # logits write
                        + M * 4),                 # preds write
    )

    kernel = functools.partial(classifier_kernel, compute_dtype=compute_dtype)

    logits2d, preds2d = pl.pallas_call(
        kernel,
        out_shape=(
            jax.ShapeDtypeStruct((M, L), jnp.float32),
            jax.ShapeDtypeStruct((M, 1), jnp.int32),
        ),
        grid=grid,
        in_specs=[
            pl.BlockSpec((TM, H), lambda i: (i, 0)),   # activation tile, pipelined
            pl.BlockSpec((H, L), lambda i: (0, 0)),    # weight resident
            pl.BlockSpec((1, L), lambda i: (0, 0)),    # bias resident
        ],
        out_specs=(
            pl.BlockSpec((TM, L), lambda i: (i, 0)),
            pl.BlockSpec((TM, 1), lambda i: (i, 0)),
        ),
        compiler_params=pltpu.CompilerParams(
            dimension_semantics=("parallel",),
            vmem_limit_bytes=int(vmem_limit),
        ),
        cost_estimate=cost,
    )(x2d, w_c, b2d)

    # Free bitcast reshapes back to the module's output shapes.
    logits = logits2d.reshape(B, S, L)
    preds = preds2d.reshape(B, S)
    return logits, preds


if __name__ == "__main__":
    # Small shapes consistent with the module's forward:
    # batch=2, seq=8, hidden=32, n_labels=3.
    B, S, H, L = 2, 8, 32, 3

    key = jax.random.PRNGKey(0)
    k_x, k_w, k_b = jax.random.split(key, 3)

    # Stand-in for plm(**inp)[0]  (the sequence output of the pretrained LM).
    sequence_output = jax.random.normal(k_x, (B, S, H), dtype=jnp.float32)

    # Deterministic init of nn.Linear(hidden_dim, n_labels): uniform(-1/sqrt(H), 1/sqrt(H)).
    bound = 1.0 / (H ** 0.5)
    w = jax.random.uniform(k_w, (H, L), minval=-bound, maxval=bound, dtype=jnp.float32)
    b = jax.random.uniform(k_b, (L,), minval=-bound, maxval=bound, dtype=jnp.float32)

    logits, preds = my_model_forward(sequence_output, w, b)
    jax.block_until_ready((logits, preds))

    # References in plain JAX.
    ref_f32 = jnp.einsum("bsh,hl->bsl", sequence_output, w,
                         precision=jax.lax.Precision.HIGHEST) + b
    xb = sequence_output.astype(jnp.bfloat16).astype(jnp.float32)
    wb = w.astype(jnp.bfloat16).astype(jnp.float32)
    ref_bf16 = jnp.einsum("bsh,hl->bsl", xb, wb,
                          precision=jax.lax.Precision.HIGHEST) + b

    assert logits.shape == (B, S, L) and preds.shape == (B, S)
    # Kernel casts to bf16 in-kernel with f32 accumulation: tight vs. bf16 reference,
    # loose vs. the pure-f32 reference (semantics preserved).
    assert jnp.allclose(logits, ref_bf16, atol=1e-3, rtol=1e-3)
    assert jnp.allclose(logits, ref_f32, atol=5e-2, rtol=5e-2)
    # Argmax must be consistent with the logits the kernel produced (first-occurrence).
    assert jnp.array_equal(preds, jnp.argmax(logits, axis=-1).astype(jnp.int32))
    assert preds.dtype == jnp.int32

    print("KERNEL_OK")
</pallas_src>

<mosaic_0001>
module attributes {stable_mosaic.version = 11 : i64} {
  func.func @classifier_kernel(%arg0: i32, %arg1: memref<8x32xf32, #tpu.memory_space<vmem>>, %arg2: memref<32x3xbf16, #tpu.memory_space<vmem>>, %arg3: memref<1x3xf32, #tpu.memory_space<vmem>>, %arg4: memref<8x3xf32, #tpu.memory_space<vmem>>, %arg5: memref<8x1xi32, #tpu.memory_space<vmem>>) attributes {dimension_semantics = [#tpu.dimension_semantics<parallel>], iteration_bounds = array<i64: 2>, scalar_prefetch = 0 : i64, scratch_operands = 0 : i64, tpu.core_type = #tpu.core_type<tc>, window_params = [{transform_indices = @transform_0, window_bounds = array<i64: 8, 32>}, {pipeline_mode = #tpu.pipeline_mode<synchronous>, transform_indices = @transform_1, window_bounds = array<i64: 32, 3>}, {pipeline_mode = #tpu.pipeline_mode<synchronous>, transform_indices = @transform_2, window_bounds = array<i64: 1, 3>}, {transform_indices = @transform_3, window_bounds = array<i64: 8, 3>}, {transform_indices = @transform_4, window_bounds = array<i64: 8, 1>}]} {
    %c0 = arith.constant 0 : index
    %c0_0 = arith.constant 0 : index
    %0 = vector.load %arg1[%c0, %c0_0] : memref<8x32xf32, #tpu.memory_space<vmem>>, vector<8x32xf32>
    %1 = arith.truncf %0 : vector<8x32xf32> to vector<8x32xbf16>
    %c0_1 = arith.constant 0 : index
    %c0_2 = arith.constant 0 : index
    %2 = vector.load %arg2[%c0_1, %c0_2] : memref<32x3xbf16, #tpu.memory_space<vmem>>, vector<32x3xbf16>
    %cst = arith.constant dense<0.000000e+00> : vector<8x3xf32>
    %3 = tpu.matmul %1, %2, %cst {dimension_numbers = #tpu.dot_dimension_numbers<[1], [0], [0], [1], [0, 0, 1, 1], [], []>} : vector<8x32xbf16>, vector<32x3xbf16>, vector<8x3xf32> -> vector<8x3xf32>
    %c0_3 = arith.constant 0 : index
    %c0_4 = arith.constant 0 : index
    %4 = vector.load %arg3[%c0_3, %c0_4] : memref<1x3xf32, #tpu.memory_space<vmem>>, vector<1x3xf32>
    %5 = vector.broadcast %4 : vector<1x3xf32> to vector<8x3xf32>
    %6 = arith.addf %3, %5 : vector<8x3xf32>
    %c0_5 = arith.constant 0 : index
    %c0_6 = arith.constant 0 : index
    %7 = vector.load %arg4[%c0_5, %c0_6] : memref<8x3xf32, #tpu.memory_space<vmem>>, vector<8x3xf32>
    tpu.vector_store %arg4[%c0_5, %c0_6], %6 {strides = array<i32>} : memref<8x3xf32, #tpu.memory_space<vmem>>, vector<8x3xf32>,
    %8 = tpu.iota {dimensions = array<i32: 1>} : vector<8x3xi32>
    %cst_7 = arith.constant dense<0xFF800000> : vector<8xf32>
    %9 = vector.multi_reduction <maximumf>, %6, %cst_7 [1] : vector<8x3xf32> to vector<8xf32>
    %10 = vector.shape_cast %9 : vector<8xf32> to vector<8x1xf32>
    %11 = vector.broadcast %10 : vector<8x1xf32> to vector<8x3xf32>
    %12 = arith.cmpf oeq, %6, %11 : vector<8x3xf32>
    %c3_i32 = arith.constant 3 : i32
    %13 = vector.broadcast %c3_i32 : i32 to vector<8x3xi32>
    %14 = arith.select %12, %8, %13 : vector<8x3xi1>, vector<8x3xi32>
    %cst_8 = arith.constant dense<2147483647> : vector<8xi32>
    %15 = vector.multi_reduction <minsi>, %14, %cst_8 [1] : vector<8x3xi32> to vector<8xi32>
    %16 = vector.shape_cast %15 : vector<8xi32> to vector<8x1xi32>
    %c0_9 = arith.constant 0 : index
    %c0_10 = arith.constant 0 : index
    %17 = vector.load %arg5[%c0_9, %c0_10] : memref<8x1xi32, #tpu.memory_space<vmem>>, vector<8x1xi32>
    tpu.vector_store %arg5[%c0_9, %c0_10], %16 {strides = array<i32>} : memref<8x1xi32, #tpu.memory_space<vmem>>, vector<8x1xi32>,
    return
  }
  func.func @transform_0(%arg0: i32) -> (i32, i32) {
    %c0_i32 = arith.constant 0 : i32
    %c0_i32_0 = arith.constant 0 : i32
    return %arg0, %c0_i32 : i32, i32
  }
  func.func @transform_1(%arg0: i32) -> (i32, i32) {
    %c0_i32 = arith.constant 0 : i32
    %c0_i32_0 = arith.constant 0 : i32
    %c0_i32_1 = arith.constant 0 : i32
    return %c0_i32, %c0_i32_0 : i32, i32
  }
  func.func @transform_2(%arg0: i32) -> (i32, i32) {
    %c0_i32 = arith.constant 0 : i32
    %c0_i32_0 = arith.constant 0 : i32
    %c0_i32_1 = arith.constant 0 : i32
    return %c0_i32, %c0_i32_0 : i32, i32
  }
  func.func @transform_3(%arg0: i32) -> (i32, i32) {
    %c0_i32 = arith.constant 0 : i32
    %c0_i32_0 = arith.constant 0 : i32
    return %arg0, %c0_i32 : i32, i32
  }
  func.func @transform_4(%arg0: i32) -> (i32, i32) {
    %c0_i32 = arith.constant 0 : i32
    %c0_i32_0 = arith.constant 0 : i32
    return %arg0, %c0_i32 : i32, i32
  }
}

</mosaic_0001>

<llo_original>
// kernel: tpu_custom_call.1
$region0: #{tpu_custom_call.1}
  #allocation0 [shape = 'u32[]', space=smem, size = 0x4, offset = 0x4, fixed_abs, tag = 'smem constant byte address 0x4 - core index']
  #allocation1 [shape = 'u32[144,128]{1,0:T(1,128)}', space=vmem, size = 0x12000, scoped, tag = 'internal scratch']
  %s0 = inlined_call_operand.vmem [shape: f32[16,32], index: 0, kind: input, shape index: {}]
  %s1 = inlined_call_operand.vmem [shape: bf16[32,3], index: 1, kind: input, shape index: {}]
  %s2 = inlined_call_operand.vmem [shape: f32[1,3], index: 2, kind: input, shape index: {}]
  %s3 = inlined_call_operand.vmem [shape: f32[16,3], index: 3, kind: output, shape index: {0}]
  %s4 = inlined_call_operand.vmem [shape: s32[16,1], index: 4, kind: output, shape index: {1}]
  %5 = xla_tuple %s3, %s4
  %s6 = sld [smem:[#allocation0]]
  $region53: #{tpu_custom_call.1} parent=0
    _
  %s8 = ssub.s32 1, %s6
  %s9 = scalar_select 0, %s8, %s6
  loop: start=0, step=1, limit=4
  $region2: #{tpu_custom_call.1} parent=0 // loop_pre_header
    _
  $region3: #{tpu_custom_call.1} parent=0 // loop_header
    %s11 = sphi 0, %s15
    %p12 = scmp.ge.s32.totalorder %s11, 4
    %s21 = sphi 0, %s23
    %s24 = sphi 0, %s21
    %s25 = sphi 0, %s24
    %s41 = sphi 0, %s25
    %s45 = sphi 0, %s45
    %s47 = sphi 0, %s45
    %s48 = sphi 0, %s47
    %s62 = sphi 0, %s48
    %s66 = sphi 0, %s66
    %s68 = sphi 0, %s66
    %s69 = sphi 0, %s68
    %s83 = sphi 0, %s69
    %s89 = sphi 0, %s91
    %s92 = sphi 0, %s89
    %s93 = sphi 0, %s92
    %s109 = sphi 0, %s93
    %s115 = sphi 0, %s117
    %s118 = sphi 0, %s115
    %s119 = sphi 0, %s118
    %s135 = sphi 0, %s119
  $region4: #{tpu_custom_call.1} parent=0 // loop_header_branch
    %14 = sbr.rel (%p12) target = $region8
  $region5: #{tpu_custom_call.1} parent=0 // loop_body
    %s16 = ssub.s32 %s11, 1
    %s17 = ssub.s32 %s11, 2
    %s18 = sadd.s32 %s11, 1
    %s19 = ssub.s32 %s11, %s18
    %p20 = scmp.eq.s32.totalorder %s19, 0
    %s22 = sadd.s32 %s21, 1
    %s23 = scalar_select %p20, %s21, %s22
    %p26 = pneg %p20
    %p27 = scmp.eq.s32.totalorder %s11, 1
    %p28 = por %p26, %p27
    %p29 = scmp.ne.s32.totalorder %s21, %s24
    %p30 = scmp.eq.s32.totalorder %s11, 0
    %p31 = por %p29, %p30
    %p32 = scmp.ne.s32.totalorder %s21, %s24
    %p33 = scmp.eq.s32.totalorder %s16, 1
    %p34 = por %p32, %p33
    %p35 = scmp.ne.s32.totalorder %s24, %s25
    %p36 = scmp.eq.s32.totalorder %s16, 0
    %p37 = por %p35, %p36
    %p38 = scmp.ne.s32.totalorder %s24, %s25
    %p39 = scmp.eq.s32.totalorder %s17, 1
    %p40 = por %p38, %p39
    %p42 = scmp.ne.s32.totalorder %s25, %s41
    %p43 = scmp.eq.s32.totalorder %s17, 0
    %p44 = por %p42, %p43
    %s46 = sadd.s32 %s45, 1
    %p49 = scmp.eq.s32.totalorder %s11, 1
    %p50 = scmp.ne.s32.totalorder %s45, %s47
    %p51 = scmp.eq.s32.totalorder %s11, 0
    %p52 = por %p50, %p51
    %p53 = scmp.ne.s32.totalorder %s45, %s47
    %p54 = scmp.eq.s32.totalorder %s16, 1
    %p55 = por %p53, %p54
    %p56 = scmp.ne.s32.totalorder %s47, %s48
    %p57 = scmp.eq.s32.totalorder %s16, 0
    %p58 = por %p56, %p57
    %p59 = scmp.ne.s32.totalorder %s47, %s48
    %p60 = scmp.eq.s32.totalorder %s17, 1
    %p61 = por %p59, %p60
    %p63 = scmp.ne.s32.totalorder %s48, %s62
    %p64 = scmp.eq.s32.totalorder %s17, 0
    %p65 = por %p63, %p64
    %s67 = sadd.s32 %s66, 1
    %p70 = scmp.eq.s32.totalorder %s11, 1
    %p71 = scmp.ne.s32.totalorder %s66, %s68
    %p72 = scmp.eq.s32.totalorder %s11, 0
    %p73 = por %p71, %p72
    %p74 = scmp.ne.s32.totalorder %s66, %s68
    %p75 = scmp.eq.s32.totalorder %s16, 1
    %p76 = por %p74, %p75
    %p77 = scmp.ne.s32.totalorder %s68, %s69
    %p78 = scmp.eq.s32.totalorder %s16, 0
    %p79 = por %p77, %p78
    %p80 = scmp.ne.s32.totalorder %s68, %s69
    %p81 = scmp.eq.s32.totalorder %s17, 1
    %p82 = por %p80, %p81
    %p84 = scmp.ne.s32.totalorder %s69, %s83
    %p85 = scmp.eq.s32.totalorder %s17, 0
    %p86 = por %p84, %p85
    %s87 = ssub.s32 %s11, %s18
    %p88 = scmp.eq.s32.totalorder %s87, 0
    %s90 = sadd.s32 %s89, 1
    %s91 = scalar_select %p88, %s89, %s90
    %p94 = pneg %p88
    %p95 = scmp.eq.s32.totalorder %s11, 1
    %p96 = por %p94, %p95
    %p97 = scmp.ne.s32.totalorder %s89, %s92
    %p98 = scmp.eq.s32.totalorder %s11, 0
    %p99 = por %p97, %p98
    %p100 = scmp.ne.s32.totalorder %s89, %s92
    %p101 = scmp.eq.s32.totalorder %s16, 1
    %p102 = por %p100, %p101
    %p103 = scmp.ne.s32.totalorder %s92, %s93
    %p104 = scmp.eq.s32.totalorder %s16, 0
    %p105 = por %p103, %p104
    %p106 = scmp.ne.s32.totalorder %s92, %s93
    %p107 = scmp.eq.s32.totalorder %s17, 1
    %p108 = por %p106, %p107
    %p110 = scmp.ne.s32.totalorder %s93, %s109
    %p111 = scmp.eq.s32.totalorder %s17, 0
    %p112 = por %p110, %p111
    %s113 = ssub.s32 %s11, %s18
    %p114 = scmp.eq.s32.totalorder %s113, 0
    %s116 = sadd.s32 %s115, 1
    %s117 = scalar_select %p114, %s115, %s116
    %p120 = pneg %p114
    %p121 = scmp.eq.s32.totalorder %s11, 1
    %p122 = por %p120, %p121
    %p123 = scmp.ne.s32.totalorder %s115, %s118
    %p124 = scmp.eq.s32.totalorder %s11, 0
    %p125 = por %p123, %p124
    %p126 = scmp.ne.s32.totalorder %s115, %s118
    %p127 = scmp.eq.s32.totalorder %s16, 1
    %p128 = por %p126, %p127
    %p129 = scmp.ne.s32.totalorder %s118, %s119
    %p130 = scmp.eq.s32.totalorder %s16, 0
    %p131 = por %p129, %p130
    %p132 = scmp.ne.s32.totalorder %s118, %s119
    %p133 = scmp.eq.s32.totalorder %s17, 1
    %p134 = por %p132, %p133
    %p136 = scmp.ne.s32.totalorder %s119, %s135
    %p137 = scmp.eq.s32.totalorder %s17, 0
    %p138 = por %p136, %p137
    %p139 = scmp.le.s32.totalorder 1, %s11
    %p140 = scmp.lt.s32.totalorder %s11, 3
    %p141 = pnand %p139, %p140
    %p142 = pneg %p141
    // Predicated region
    $region9: #{tpu_custom_call.1} parent=5 // pred_check
      _
    $region10: #{tpu_custom_call.1} parent=5 // pred_check_branch
      %144 = sbr.rel (%p141) target = $region12
    $region11: #{tpu_custom_call.1} parent=5 // pred_region
      %s145 = ssub.s32 %s11, 1
      // Predicated region
      $region13: #{tpu_custom_call.1} parent=11 // pred_check
        %p146 = pneg %p58
      $region14: #{tpu_custom_call.1} parent=11 // pred_check_branch
        %148 = sbr.rel (%p146) target = $region16
      $region15: #{tpu_custom_call.1} parent=11 // pred_region
        _
      $region16: #{tpu_custom_call.1} parent=11 // pred_fallthru
        _
      // Predicated region
      $region17: #{tpu_custom_call.1} parent=11 // pred_check
        %p149 = pneg %p79
      $region18: #{tpu_custom_call.1} parent=11 // pred_check_branch
        %151 = sbr.rel (%p149) target = $region20
      $region19: #{tpu_custom_call.1} parent=11 // pred_region
        _
      $region20: #{tpu_custom_call.1} parent=11 // pred_fallthru
        _
    $region12: #{tpu_custom_call.1} parent=5 // pred_fallthru
      _
    %p152 = scmp.lt.s32.totalorder %s11, 2
    // Predicated region
    $region21: #{tpu_custom_call.1} parent=5 // pred_check
      %p153 = pneg %p152
    $region22: #{tpu_custom_call.1} parent=5 // pred_check_branch
      %155 = sbr.rel (%p153) target = $region24
    $region23: #{tpu_custom_call.1} parent=5 // pred_region
      // Predicated region
      $region25: #{tpu_custom_call.1} parent=23 // pred_check
        %p156 = pneg %p31
      $region26: #{tpu_custom_call.1} parent=23 // pred_check_branch
        %158 = sbr.rel (%p156) target = $region28
      $region27: #{tpu_custom_call.1} parent=23 // pred_region
        %p159 = scmp.lt.s32.totalorder %s11, 1
        %s160 = scalar_select %p159, %s11, 1
        %s161 = smul.addr %s160, 8
        %s162 = scalar_lea.vmem %s0, %s161
      $region28: #{tpu_custom_call.1} parent=23 // pred_fallthru
        _
    $region24: #{tpu_custom_call.1} parent=5 // pred_fallthru
      _
    %p163 = scmp.le.s32.totalorder 1, %s11
    %p164 = scmp.lt.s32.totalorder %s11, 3
    %p165 = pnand %p163, %p164
    %p166 = pneg %p165
    // Predicated region
    $region29: #{tpu_custom_call.1} parent=5 // pred_check
      _
    $region30: #{tpu_custom_call.1} parent=5 // pred_check_branch
      %168 = sbr.rel (%p165) target = $region32
    $region31: #{tpu_custom_call.1} parent=5 // pred_region
      %s169 = ssub.s32 %s11, 1
      %p170 = scmp.lt.s32.totalorder %s16, 1
      %s171 = scalar_select %p170, %s16, 1
      %s172 = smul.addr %s171, 8
      %s173 = scalar_lea.vmem %s0, %s172
      %p174 = pneg %p37
      %p175 = pneg %p34
      %p176 = pneg %p58
      %p177 = pneg %p55
      %p178 = pneg %p79
      %p179 = pneg %p76
      %p180 = pneg %p105
      %p181 = pneg %p102
      %p182 = scmp.lt.s32.totalorder %s16, 1
      %s183 = scalar_select %p182, %s16, 1
      %s184 = smul.addr %s183, 8
      %s185 = scalar_lea.vmem %s3, %s184
      %p186 = pneg %p131
      %p187 = pneg %p128
      %p188 = scmp.lt.s32.totalorder %s16, 1
      %s189 = scalar_select %p188, %s16, 1
      %s190 = smul.addr %s189, 8
      %s191 = scalar_lea.vmem %s4, %s190
      %p192 = scmp.lt.s32.totalorder %s16, 1
      %s193 = scalar_select %p192, %s16, 1
      %s194 = smul.addr %s193, 8
      %s195 = scalar_lea.vmem %s0, %s194
      %p196 = scmp.lt.s32.totalorder %s16, 1
      %s197 = scalar_select %p196, %s16, 1
      %s198 = smul.addr %s197, 8
      %s199 = scalar_lea.vmem %s3, %s198
      %p200 = scmp.lt.s32.totalorder %s16, 1
      %s201 = scalar_select %p200, %s16, 1
      %s202 = smul.addr %s201, 8
      %s203 = scalar_lea.vmem %s4, %s202
      %v205 = vld [vmem:[%s195] sm:$0xff]
      %v206 = vpack.c.bf16 %v205, %v205
      %v207 = vld [vmem:[%s1] sm:$0xf]
      %v208 = vld [vmem:[%s1 + $0x4] sm:$0xf]
      %v209 = vld [vmem:[%s1 + $0x8] sm:$0xf]
      %v210 = vld [vmem:[%s1 + $0xc] sm:$0xf]
      %v211 = vld [vmem:[%s2] sm:$0x1]
      %v213 = vlaneseq
      %v214 = vshrl.u32 %v213, 7
      %v215 = vsub.s32 0, %v214
      %v216 = vrot.slane %v211, %v215
      %v222 = vunpack.c.l.b16 %v207
      %v223 = vunpack.c.l.b16 %v208
      %v224 = vunpack.c.l.b16 %v209
      %v225 = vunpack.c.l.b16 %v210
      %v226 = vpack.c.b16 %v223, %v222
      %v227 = vpack.c.b16 %v225, %v224
      %vm230 = vcmask 261120
      %v232 = vsel %vm230, %v206, 0
      %234 = vmatprep.subr.bf16.mxu0 0
      %235 = vmatpush1.bf16.msra.mxu0 %v226
      %236 = vmatprep.subr.bf16.mxu0 0
      %237 = vmatpush1.bf16.msra.mxu0 %v227
      %238 = vmatprep.subr.bf16.mxu0 0
      %239 = vmatpush1.bf16.msra.mxu0 0
      %240 = vmatprep.subr.bf16.mxu0 0
      %241 = vmatpush1.bf16.msra.mxu0 0
      %242 = vmatprep.subr.bf16.mxu0 0
      %243 = vmatpush1.bf16.msra.mxu0 0
      %244 = vmatprep.subr.bf16.mxu0 0
      %245 = vmatpush1.bf16.msra.mxu0 0
      %246 = vmatprep.subr.bf16.mxu0 0
      %247 = vmatpush1.bf16.msra.mxu0 0
      %248 = vmatprep.subr.bf16.mxu0 0
      %249 = vmatpush1.bf16.msra.mxu0 0
      %250 = vmatprep.subr.bf16.mxu0 0
      %251 = vmatpush1.bf16.msra.mxu0 0
      %252 = vmatprep.subr.bf16.mxu0 0
      %253 = vmatpush1.bf16.msra.mxu0 0
      %254 = vmatprep.subr.bf16.mxu0 0
      %255 = vmatpush1.bf16.msra.mxu0 0
      %256 = vmatprep.subr.bf16.mxu0 0
      %257 = vmatpush1.bf16.msra.mxu0 0
      %258 = vmatprep.subr.bf16.mxu0 0
      %259 = vmatpush1.bf16.msra.mxu0 0
      %260 = vmatprep.subr.bf16.mxu0 0
      %261 = vmatpush1.bf16.msra.mxu0 0
      %262 = vmatprep.subr.bf16.mxu0 0
      %263 = vmatpush1.bf16.msra.mxu0 0
      %264 = vmatprep.subr.bf16.mxu0 0
      %265 = vmatpush1.bf16.msra.mxu0 0
      %266 = vmatprep.mubr.bf16.mxu0 0
      %267 = vmatmul.mubr.bf16.gmra.mrb[0].mxu0 %v232
      %v268 = vpop.f32.mrb[0].mxu0
      %v269 = vadd.f32 %v216, %v268
      %v270 = vpop.f32.mrb[0].mxu0
      %v271 = vpop.f32.mrb[0].mxu0
      %v272 = vpop.f32.mrb[0].mxu0
      %273 = vdwg.mxu0
      %vm274 = vcmask 23552
      %275 = vst.msk [vmem:[%s199] sm:$0xff] %vm274, %v269
      %v276 = vlaneseq
      %v277 = vand.u32 %v276, 127
      %v278 = vsel %vm274, %v269, -inf
      %279 = vmax.xlane.f32.xlu0 %v278
      %v280 = vpop.xlane.xlu0 %279
      %vm281 = vcmp.eq.f32.partialorder %v269, %v280
      %v282 = vsel %vm281, %v277, 3
      %v283 = vsel %vm274, %v282, 2147483647
      %v284 = vand.u32 %v283, 65535
      %v285 = vshra.s32 %v283, 16
      %v286 = vcvt.s32.f32 %v284
      %v287 = vcvt.s32.f32 %v285
      %288 = vmin.xlane.f32.xlu0 %v287
      %v289 = vpop.xlane.xlu0 %288
      %vm290 = vcmp.eq.f32.partialorder %v287, %v289
      %v291 = vsel %vm290, %v286, inf
      %292 = vmin.xlane.f32.xlu0 %v291
      %v293 = vpop.xlane.xlu0 %292
      %v294 = vcvt.f32.s32 %v293
      %v295 = vcvt.f32.s32 %v289
      %v296 = vshll.u32 %v295, 16
      %v297 = vadd.s32 %v296, %v294
      %vm298 = vcmask 7168
      %299 = vst.msk [vmem:[%s203] sm:$0xff] %vm298, %v297
      %p300 = scmp.lt.s32.totalorder %s16, 1
      %s301 = scalar_select %p300, %s16, 1
      %s302 = smul.addr %s301, 8
      %s303 = scalar_lea.vmem %s3, %s302
      %p304 = scmp.lt.s32.totalorder %s16, 1
      %s305 = scalar_select %p304, %s16, 1
      %s306 = smul.addr %s305, 8
      %s307 = scalar_lea.vmem %s4, %s306
      // Predicated region
      $region33: #{tpu_custom_call.1} parent=31 // pred_check
        %p308 = pneg %p102
      $region34: #{tpu_custom_call.1} parent=31 // pred_check_branch
        %310 = sbr.rel (%p308) target = $region36
      $region35: #{tpu_custom_call.1} parent=31 // pred_region
        _
      $region36: #{tpu_custom_call.1} parent=31 // pred_fallthru
        _
      // Predicated region
      $region37: #{tpu_custom_call.1} parent=31 // pred_check
        %p311 = pneg %p128
      $region38: #{tpu_custom_call.1} parent=31 // pred_check_branch
        %313 = sbr.rel (%p311) target = $region40
      $region39: #{tpu_custom_call.1} parent=31 // pred_region
        _
      $region40: #{tpu_custom_call.1} parent=31 // pred_fallthru
        _
    $region32: #{tpu_custom_call.1} parent=5 // pred_fallthru
      _
    %p314 = scmp.le.s32.totalorder 2, %s11
    // Predicated region
    $region41: #{tpu_custom_call.1} parent=5 // pred_check
      %p315 = pneg %p314
    $region42: #{tpu_custom_call.1} parent=5 // pred_check_branch
      %317 = sbr.rel (%p315) target = $region44
    $region43: #{tpu_custom_call.1} parent=5 // pred_region
      %s318 = ssub.s32 %s11, 2
      // Predicated region
      $region45: #{tpu_custom_call.1} parent=43 // pred_check
        %p319 = pneg %p108
      $region46: #{tpu_custom_call.1} parent=43 // pred_check_branch
        %321 = sbr.rel (%p319) target = $region48
      $region47: #{tpu_custom_call.1} parent=43 // pred_region
        %p322 = scmp.lt.s32.totalorder %s17, 1
        %s323 = scalar_select %p322, %s17, 1
        %s324 = smul.addr %s323, 8
        %s325 = scalar_lea.vmem %s3, %s324
      $region48: #{tpu_custom_call.1} parent=43 // pred_fallthru
        _
      // Predicated region
      $region49: #{tpu_custom_call.1} parent=43 // pred_check
        %p326 = pneg %p134
      $region50: #{tpu_custom_call.1} parent=43 // pred_check_branch
        %328 = sbr.rel (%p326) target = $region52
      $region51: #{tpu_custom_call.1} parent=43 // pred_region
        %p329 = scmp.lt.s32.totalorder %s17, 1
        %s330 = scalar_select %p329, %s17, 1
        %s331 = smul.addr %s330, 8
        %s332 = scalar_lea.vmem %s4, %s331
      $region52: #{tpu_custom_call.1} parent=43 // pred_fallthru
        _
    $region44: #{tpu_custom_call.1} parent=5 // pred_fallthru
      _
  $region6: #{tpu_custom_call.1} parent=0 // loop_footer
    %s15 = sadd.s32 1, %s11
  $region7: #{tpu_custom_call.1} parent=0 // loop_footer_branch
    %10 = sbr.rel target = $region3
  $region8: #{tpu_custom_call.1} parent=0 // loop_exit
    _

</llo_original>
